<compile_context>
chip_gen: v6e
topology: v6e:2x2x1
jax: 0.10.0
libtpu: 0.0.40
codegen_flags: <defaults>
</compile_context>

<pallas_src>
import jax
import jax.numpy as jnp
import numpy as np
from jax.experimental import pallas as pl
from jax.experimental.pallas import tpu as pltpu

# ----------------------------- problem sizes -----------------------------
N_REFL = 64          # reflections in the reciprocal ASU
N_OBS = 128          # observations
N_IMAGES = 8         # images
MC_SAMPLES = 32      # Monte-Carlo samples
D_META = 5           # metadata features
F_DIM = 2 + 2 + D_META   # Imodel(2) + Iscale(2) + metadata = 9
H_DIM = 16           # scaling-MLP hidden width
N_OPS = 2            # reindexing ops (identity, Friedel)
KL_WEIGHT = 1.0
TOTAL = N_OPS * N_OBS    # op axis folded onto the lane axis

_LOG_2PI = float(np.log(2.0 * np.pi))

# parameter-slab column layout (slab shape (H_DIM, 128))
_SLAB_W1 = 0               # cols [0, F_DIM)      : W1^T           (H, F)
_SLAB_B1 = F_DIM           # col  F_DIM           : b1 (column)    (H, 1)
_SLAB_W2 = F_DIM + 1       # col  F_DIM + 1       : W2 (column)    (H, 1)
_SLAB_B2 = F_DIM + 2       # [0, F_DIM + 2]       : b2 scalar
_SLAB_Q = 64               # rows 0/1, cols [64, 64+N_REFL): loc / scale_q


# ------------------------------ fused kernel ------------------------------
def merge_kernel(feat_ref, zg_ref, onehot_ref, slab_ref, out_ref):
    feat = feat_ref[...]                           # (F_DIM+1, TOTAL)
    zg = zg_ref[...]                               # (MC, TOTAL)
    slab = slab_ref[...]                           # (H_DIM, 128) param slab

    # --- carve the packed parameter slab (static slices, zero DMA cost) ----
    W1T = slab[:, _SLAB_W1:_SLAB_W1 + F_DIM]       # (H, F)
    b1c = slab[:, _SLAB_B1:_SLAB_B1 + 1]           # (H, 1)
    w2c = slab[:, _SLAB_W2:_SLAB_W2 + 1]           # (H, 1)
    b2 = slab[0:1, _SLAB_B2:_SLAB_B2 + 1]          # (1, 1)
    loc = slab[0:1, _SLAB_Q:_SLAB_Q + N_REFL]      # (1, N_REFL)
    scq = slab[1:2, _SLAB_Q:_SLAB_Q + N_REFL]      # (1, N_REFL)

    feat9 = feat[0:F_DIM, :]                       # (F, TOTAL) MLP features
    I_row = feat[2:3, :]                           # (1, TOTAL) = Iscale col 0
    Sig_row = feat[3:4, :]                         # (1, TOTAL) = Iscale col 1
    bias_row = feat[F_DIM:F_DIM + 1, :]            # (1, TOTAL) image bias

    # --- scaling model ------------------------------------------------------
    # layer 1 on the MXU: (H, F) @ (F, TOTAL) -> (H, TOTAL), lane-dense
    h = jnp.maximum(
        jnp.dot(W1T, feat9, preferred_element_type=jnp.float32) + b1c, 0.0)
    # layer 2: single-output -> sublane reduce (XLU) instead of an MXU matmul
    s_raw = jnp.sum(h * w2c, axis=0, keepdims=True) + b2 + bias_row  # (1,TOTAL)
    scale = jax.nn.softplus(s_raw)                                   # (1,TOTAL)

    # --- Gaussian log-likelihood (rows broadcast over the MC sublanes) ------
    inv_sig = 1.0 / Sig_row                        # (1, TOTAL) divides only
    log_sig = jnp.log(Sig_row)                     # (1, TOTAL) EUP
    Ipred = zg * scale                             # (MC, TOTAL)
    resid = (I_row - Ipred) * inv_sig
    ll = -0.5 * resid * resid - log_sig - 0.5 * _LOG_2PI             # (MC,TOTAL)

    # --- per-(op, image) segment sum: two MXU dots on the 128-lane halves ---
    onehot = onehot_ref[...]                       # (N_OBS, N_IMAGES)
    inv_mc2 = 1.0 / float(MC_SAMPLES * MC_SAMPLES)
    per_op = []
    for op in range(N_OPS):                        # static Python loop
        seg = jnp.dot(ll[:, op * N_OBS:(op + 1) * N_OBS], onehot,
                      preferred_element_type=jnp.float32)            # (MC, IMG)
        per_op.append(jnp.sum(seg, axis=0, keepdims=True) * inv_mc2) # (1, IMG)

    # --- max / argmax over reindexing ops (first-max tie-break) -------------
    vals = per_op[0]                               # (1, IMG)
    idx = jnp.zeros((1, N_IMAGES), jnp.float32)
    for op in range(1, N_OPS):
        better = per_op[op] > vals
        idx = jnp.where(better, float(op), idx)
        vals = jnp.where(better, per_op[op], vals)

    ll_mean = jnp.mean(vals)

    # --- KL( N(loc, sc) || N(0, 1) ), averaged over reflections -------------
    kl = jnp.mean(0.5 * (scq * scq + loc * loc - 1.0) - jnp.log(scq))
    elbo = -ll_mean + KL_WEIGHT * kl

    # --- single lane-dense output row: lane 0 = elbo, lanes 1..IMG = op idx -
    col = jax.lax.broadcasted_iota(jnp.int32, (N_IMAGES, 128), 1)
    row = jax.lax.broadcasted_iota(jnp.int32, (N_IMAGES, 128), 0)
    place = (col == row + 1).astype(jnp.float32)           # P[i, i+1] = 1
    idx_row = jnp.dot(idx, place, preferred_element_type=jnp.float32)  # (1,128)
    lane = jax.lax.broadcasted_iota(jnp.int32, (1, 128), 1)
    out_ref[...] = jnp.where(lane == 0, elbo, idx_row)


# ------------------------------ glue / wrapper ----------------------------
def reciprocal_asu(hkl):
    # deterministic synthetic hash of hkl into [0, N_REFL)
    return jnp.mod(hkl[:, 0] * 131 + hkl[:, 1] * 17 + hkl[:, 2] * 3, N_REFL)


REINDEXING_OPS = (lambda h: h, lambda h: -h)

_COST = pl.CostEstimate(flops=270_000, transcendentals=1_000,
                        bytes_accessed=60_000)


@jax.jit
def merging_forward(params, hkl, I, SigI, image_id, metadata, eps):
    loc = params['loc']
    scale_q = jax.nn.softplus(params['raw_scale'])

    # reindexing gather glue, op axis folded onto the lane axis
    refl_id = jnp.concatenate(
        [reciprocal_asu(op(hkl)) for op in REINDEXING_OPS], axis=0)   # (TOTAL,)

    I2 = jnp.tile(I, (N_OPS,))
    Sig2 = jnp.tile(SigI, (N_OPS,))
    meta2 = jnp.tile(metadata.T, (1, N_OPS))                           # (D, TOTAL)
    bias2 = jnp.tile(params['image_bias'][image_id], (N_OPS,))
    # transposed feature block, rows = [loc_g, sc_g, I, SigI, meta..., bias]
    featT = jnp.concatenate(
        [loc[refl_id][None, :], scale_q[refl_id][None, :],
         I2[None, :], Sig2[None, :], meta2, bias2[None, :]],
        axis=0).astype(jnp.float32)                                    # (F+1, TOTAL)

    z = loc[None, :] + scale_q[None, :] * eps                          # (MC, N_REFL)
    zgT = z[:, refl_id].astype(jnp.float32)                            # (MC, TOTAL)

    # lane-minor one-hot image mask (N_OBS, N_IMAGES)
    onehot = (image_id[:, None] == jnp.arange(N_IMAGES)[None, :]
              ).astype(jnp.float32)

    # one lane-dense parameter slab -> a single DMA for all small params
    slab = jnp.zeros((H_DIM, 128), jnp.float32)
    slab = slab.at[:, _SLAB_W1:_SLAB_W1 + F_DIM].set(params['W1'].T)
    slab = slab.at[:, _SLAB_B1].set(params['b1'][0])
    slab = slab.at[:, _SLAB_W2].set(params['W2'][:, 0])
    slab = slab.at[0, _SLAB_B2].set(params['b2'][0, 0])
    slab = slab.at[0, _SLAB_Q:_SLAB_Q + N_REFL].set(loc)
    slab = slab.at[1, _SLAB_Q:_SLAB_Q + N_REFL].set(scale_q)

    vspec = pl.BlockSpec(memory_space=pltpu.MemorySpace.VMEM)
    out = pl.pallas_call(
        merge_kernel,
        out_shape=jax.ShapeDtypeStruct((1, 128), jnp.float32),
        in_specs=[vspec, vspec, vspec, vspec],
        out_specs=vspec,
        cost_estimate=_COST,
    )(featT, zgT, onehot, slab)

    elbo = out[0, 0]
    op_idx = out[0, 1:1 + N_IMAGES].astype(jnp.int32)
    return elbo, op_idx


# ------------------------- pure-JAX reference -----------------------------
def reference_forward(params, hkl, I, SigI, image_id, metadata, eps):
    loc = params['loc']
    scale_q = jax.nn.softplus(params['raw_scale'])
    kl = jnp.mean(0.5 * (scale_q ** 2 + loc ** 2 - 1.0) - jnp.log(scale_q))
    Imodel = jnp.stack([loc, scale_q], -1)
    Iscale = jnp.stack([I, SigI], -1)
    z = loc[None] + scale_q[None] * eps
    zT = z.T
    lls = []
    for op in REINDEXING_OPS:
        refl_id = reciprocal_asu(op(hkl))
        feat = jnp.concatenate([Imodel[refl_id], Iscale, metadata], -1)
        h1 = jnp.maximum(feat @ params['W1'] + params['b1'], 0.0)
        s_raw = (h1 @ params['W2'] + params['b2']
                 + params['image_bias'][image_id][:, None])
        scale = jax.nn.softplus(s_raw)
        Ipred = zT[refl_id] * scale
        ll = (-0.5 * ((I[:, None] - Ipred) / SigI[:, None]) ** 2
              - jnp.log(SigI[:, None]) - 0.5 * _LOG_2PI)
        per = jax.ops.segment_sum(ll, image_id, N_IMAGES) / MC_SAMPLES
        lls.append(per.mean(-1, keepdims=True))
    llc = jnp.concatenate(lls, -1)                 # (n_images, n_ops)
    vals = llc.max(-1)
    idx = llc.argmax(-1)
    elbo = -vals.mean() + KL_WEIGHT * kl
    return elbo, idx


# ------------------------------ parameters --------------------------------
def init_params(key):
    ks = jax.random.split(key, 5)
    return dict(
        loc=1.0 + 0.1 * jax.random.normal(ks[0], (N_REFL,), jnp.float32),
        raw_scale=-1.0 + 0.1 * jax.random.normal(ks[1], (N_REFL,), jnp.float32),
        W1=0.3 * jax.random.normal(ks[2], (F_DIM, H_DIM), jnp.float32),
        b1=jnp.zeros((1, H_DIM), jnp.float32),
        W2=0.3 * jax.random.normal(ks[3], (H_DIM, 1), jnp.float32),
        b2=jnp.zeros((1, 1), jnp.float32),
        image_bias=0.1 * jax.random.normal(ks[4], (N_IMAGES,), jnp.float32),
    )


if __name__ == "__main__":
    key = jax.random.PRNGKey(0)
    kp, kh, ki, ks, kim, km, ke = jax.random.split(key, 7)

    params = init_params(kp)
    hkl = jax.random.randint(kh, (N_OBS, 3), -5, 6, dtype=jnp.int32)
    I = 1.0 + jnp.abs(jax.random.normal(ki, (N_OBS,), jnp.float32))
    SigI = 0.1 + 0.1 * jnp.abs(jax.random.normal(ks, (N_OBS,), jnp.float32))
    image_id = jax.random.randint(kim, (N_OBS,), 0, N_IMAGES, dtype=jnp.int32)
    metadata = jax.random.normal(km, (N_OBS, D_META), jnp.float32)
    eps = jax.random.normal(ke, (MC_SAMPLES, N_REFL), jnp.float32)

    elbo, op_idx = merging_forward(params, hkl, I, SigI, image_id,
                                   metadata, eps)
    elbo = jax.block_until_ready(elbo)
    op_idx = jax.block_until_ready(op_idx)

    elbo_ref, op_idx_ref = reference_forward(params, hkl, I, SigI, image_id,
                                             metadata, eps)

    np.testing.assert_allclose(np.asarray(elbo), np.asarray(elbo_ref),
                               rtol=1e-3, atol=1e-3)
    assert op_idx.shape == (N_IMAGES,)
    assert np.array_equal(np.asarray(op_idx), np.asarray(op_idx_ref))
    print("KERNEL_OK")
</pallas_src>

<mosaic_0001>
module attributes {stable_mosaic.version = 11 : i64} {
  func.func @merge_kernel(%arg0: memref<10x256xf32, #tpu.memory_space<vmem>>, %arg1: memref<32x256xf32, #tpu.memory_space<vmem>>, %arg2: memref<128x8xf32, #tpu.memory_space<vmem>>, %arg3: memref<16x128xf32, #tpu.memory_space<vmem>>, %arg4: memref<1x128xf32, #tpu.memory_space<vmem>>) attributes {dimension_semantics = [], scalar_prefetch = 0 : i64, scratch_operands = 0 : i64, tpu.core_type = #tpu.core_type<tc>} {
    %c0 = arith.constant 0 : index
    %c0_0 = arith.constant 0 : index
    %0 = vector.load %arg0[%c0, %c0_0] : memref<10x256xf32, #tpu.memory_space<vmem>>, vector<10x256xf32>
    %c0_1 = arith.constant 0 : index
    %c0_2 = arith.constant 0 : index
    %1 = vector.load %arg1[%c0_1, %c0_2] : memref<32x256xf32, #tpu.memory_space<vmem>>, vector<32x256xf32>
    %c0_3 = arith.constant 0 : index
    %c0_4 = arith.constant 0 : index
    %2 = vector.load %arg3[%c0_3, %c0_4] : memref<16x128xf32, #tpu.memory_space<vmem>>, vector<16x128xf32>
    %3 = vector.extract_strided_slice %2 {offsets = [0, 0], sizes = [16, 9], strides = [1, 1]} : vector<16x128xf32> to vector<16x9xf32>
    %4 = vector.extract_strided_slice %2 {offsets = [0, 9], sizes = [16, 1], strides = [1, 1]} : vector<16x128xf32> to vector<16x1xf32>
    %5 = vector.extract_strided_slice %2 {offsets = [0, 10], sizes = [16, 1], strides = [1, 1]} : vector<16x128xf32> to vector<16x1xf32>
    %6 = vector.extract_strided_slice %2 {offsets = [0, 11], sizes = [1, 1], strides = [1, 1]} : vector<16x128xf32> to vector<1x1xf32>
    %7 = vector.extract_strided_slice %2 {offsets = [0, 64], sizes = [1, 64], strides = [1, 1]} : vector<16x128xf32> to vector<1x64xf32>
    %8 = vector.extract_strided_slice %2 {offsets = [1, 64], sizes = [1, 64], strides = [1, 1]} : vector<16x128xf32> to vector<1x64xf32>
    %9 = vector.extract_strided_slice %0 {offsets = [0, 0], sizes = [9, 256], strides = [1, 1]} : vector<10x256xf32> to vector<9x256xf32>
    %10 = vector.extract_strided_slice %0 {offsets = [2, 0], sizes = [1, 256], strides = [1, 1]} : vector<10x256xf32> to vector<1x256xf32>
    %11 = vector.extract_strided_slice %0 {offsets = [3, 0], sizes = [1, 256], strides = [1, 1]} : vector<10x256xf32> to vector<1x256xf32>
    %12 = vector.extract_strided_slice %0 {offsets = [9, 0], sizes = [1, 256], strides = [1, 1]} : vector<10x256xf32> to vector<1x256xf32>
    %cst = arith.constant dense<0.000000e+00> : vector<16x256xf32>
    %13 = tpu.matmul %3, %9, %cst {dimension_numbers = #tpu.dot_dimension_numbers<[1], [0], [0], [1], [0, 0, 1, 1], [], []>} : vector<16x9xf32>, vector<9x256xf32>, vector<16x256xf32> -> vector<16x256xf32>
    %14 = vector.broadcast %4 : vector<16x1xf32> to vector<16x256xf32>
    %15 = arith.addf %13, %14 : vector<16x256xf32>
    %cst_5 = arith.constant 0.000000e+00 : f32
    %16 = vector.broadcast %cst_5 : f32 to vector<16x256xf32>
    %17 = arith.maximumf %15, %16 : vector<16x256xf32>
    %18 = vector.broadcast %5 : vector<16x1xf32> to vector<16x256xf32>
    %19 = arith.mulf %17, %18 : vector<16x256xf32>
    %cst_6 = arith.constant dense<0.000000e+00> : vector<256xf32>
    %20 = vector.multi_reduction <add>, %19, %cst_6 [0] : vector<16x256xf32> to vector<256xf32>
    %21 = vector.shape_cast %20 : vector<256xf32> to vector<1x256xf32>
    %22 = vector.broadcast %6 : vector<1x1xf32> to vector<1x256xf32>
    %23 = arith.addf %21, %22 : vector<1x256xf32>
    %24 = arith.addf %23, %12 : vector<1x256xf32>
    %cst_7 = arith.constant 0.000000e+00 : f32
    %25 = vector.broadcast %cst_7 : f32 to vector<1x256xf32>
    %26 = arith.maximumf %24, %25 : vector<1x256xf32>
    %27 = vector.broadcast %cst_7 : f32 to vector<1x256xf32>
    %28 = arith.subf %24, %27 : vector<1x256xf32>
    %29 = arith.cmpf one, %28, %28 : vector<1x256xf32>
    %30 = vector.broadcast %cst_7 : f32 to vector<1x256xf32>
    %31 = arith.addf %24, %30 : vector<1x256xf32>
    %32 = math.absf %28 : vector<1x256xf32>
    %cst_8 = arith.constant 0.000000e+00 : f32
    %33 = vector.broadcast %cst_8 : f32 to vector<1x256xf32>
    %34 = arith.subf %33, %32 : vector<1x256xf32>
    %35 = math.exp %34 : vector<1x256xf32>
    %36 = math.log1p %35 : vector<1x256xf32>
    %37 = arith.addf %26, %36 : vector<1x256xf32>
    %38 = arith.select %29, %31, %37 : vector<1x256xi1>, vector<1x256xf32>
    %cst_9 = arith.constant 1.000000e+00 : f32
    %39 = vector.broadcast %cst_9 : f32 to vector<1x256xf32>
    %40 = arith.divf %39, %11 : vector<1x256xf32>
    %41 = math.log %11 : vector<1x256xf32>
    %42 = vector.broadcast %38 : vector<1x256xf32> to vector<32x256xf32>
    %43 = arith.mulf %1, %42 : vector<32x256xf32>
    %44 = vector.broadcast %10 : vector<1x256xf32> to vector<32x256xf32>
    %45 = arith.subf %44, %43 : vector<32x256xf32>
    %46 = vector.broadcast %40 : vector<1x256xf32> to vector<32x256xf32>
    %47 = arith.mulf %45, %46 : vector<32x256xf32>
    %cst_10 = arith.constant -5.000000e-01 : f32
    %48 = vector.broadcast %cst_10 : f32 to vector<32x256xf32>
    %49 = arith.mulf %48, %47 : vector<32x256xf32>
    %50 = arith.mulf %49, %47 : vector<32x256xf32>
    %51 = vector.broadcast %41 : vector<1x256xf32> to vector<32x256xf32>
    %52 = arith.subf %50, %51 : vector<32x256xf32>
    %cst_11 = arith.constant 0.918938517 : f32
    %53 = vector.broadcast %cst_11 : f32 to vector<32x256xf32>
    %54 = arith.subf %52, %53 : vector<32x256xf32>
    %c0_12 = arith.constant 0 : index
    %c0_13 = arith.constant 0 : index
    %55 = vector.load %arg2[%c0_12, %c0_13] : memref<128x8xf32, #tpu.memory_space<vmem>>, vector<128x8xf32>
    %56 = vector.extract_strided_slice %54 {offsets = [0, 0], sizes = [32, 128], strides = [1, 1]} : vector<32x256xf32> to vector<32x128xf32>
    %cst_14 = arith.constant dense<0.000000e+00> : vector<32x8xf32>
    %57 = tpu.matmul %56, %55, %cst_14 {dimension_numbers = #tpu.dot_dimension_numbers<[1], [0], [0], [1], [0, 0, 1, 1], [], []>} : vector<32x128xf32>, vector<128x8xf32>, vector<32x8xf32> -> vector<32x8xf32>
    %cst_15 = arith.constant dense<0.000000e+00> : vector<8xf32>
    %58 = vector.multi_reduction <add>, %57, %cst_15 [0] : vector<32x8xf32> to vector<8xf32>
    %59 = vector.shape_cast %58 : vector<8xf32> to vector<1x8xf32>
    %cst_16 = arith.constant 9.765625E-4 : f32
    %60 = vector.broadcast %cst_16 : f32 to vector<1x8xf32>
    %61 = arith.mulf %59, %60 : vector<1x8xf32>
    %62 = vector.extract_strided_slice %54 {offsets = [0, 128], sizes = [32, 128], strides = [1, 1]} : vector<32x256xf32> to vector<32x128xf32>
    %cst_17 = arith.constant dense<0.000000e+00> : vector<32x8xf32>
    %63 = tpu.matmul %62, %55, %cst_17 {dimension_numbers = #tpu.dot_dimension_numbers<[1], [0], [0], [1], [0, 0, 1, 1], [], []>} : vector<32x128xf32>, vector<128x8xf32>, vector<32x8xf32> -> vector<32x8xf32>
    %cst_18 = arith.constant dense<0.000000e+00> : vector<8xf32>
    %64 = vector.multi_reduction <add>, %63, %cst_18 [0] : vector<32x8xf32> to vector<8xf32>
    %65 = vector.shape_cast %64 : vector<8xf32> to vector<1x8xf32>
    %cst_19 = arith.constant 9.765625E-4 : f32
    %66 = vector.broadcast %cst_19 : f32 to vector<1x8xf32>
    %67 = arith.mulf %65, %66 : vector<1x8xf32>
    %cst_20 = arith.constant 0.000000e+00 : f32
    %68 = vector.broadcast %cst_20 : f32 to vector<1x8xf32>
    %69 = arith.cmpf ogt, %67, %61 : vector<1x8xf32>
    %cst_21 = arith.constant 1.000000e+00 : f32
    %70 = vector.broadcast %cst_21 : f32 to vector<1x8xf32>
    %71 = arith.select %69, %70, %68 : vector<1x8xi1>, vector<1x8xf32>
    %72 = arith.select %69, %67, %61 : vector<1x8xi1>, vector<1x8xf32>
    %73 = vector.shape_cast %72 : vector<1x8xf32> to vector<1x1x8xf32>
    %cst_22 = arith.constant dense<0.000000e+00> : vector<1xf32>
    %74 = vector.multi_reduction <add>, %73, %cst_22 [1, 2] : vector<1x1x8xf32> to vector<1xf32>
    %75 = vector.shape_cast %74 : vector<1xf32> to vector<1x1x1xf32>
    %76 = vector.extract %75[0, 0, 0] : f32 from vector<1x1x1xf32>
    %cst_23 = arith.constant 8.000000e+00 : f32
    %77 = arith.divf %76, %cst_23 : f32
    %78 = arith.mulf %8, %8 : vector<1x64xf32>
    %79 = arith.mulf %7, %7 : vector<1x64xf32>
    %80 = arith.addf %78, %79 : vector<1x64xf32>
    %cst_24 = arith.constant 1.000000e+00 : f32
    %81 = vector.broadcast %cst_24 : f32 to vector<1x64xf32>
    %82 = arith.subf %80, %81 : vector<1x64xf32>
    %cst_25 = arith.constant 5.000000e-01 : f32
    %83 = vector.broadcast %cst_25 : f32 to vector<1x64xf32>
    %84 = arith.mulf %83, %82 : vector<1x64xf32>
    %85 = math.log %8 : vector<1x64xf32>
    %86 = arith.subf %84, %85 : vector<1x64xf32>
    %87 = vector.shape_cast %86 : vector<1x64xf32> to vector<1x1x64xf32>
    %cst_26 = arith.constant dense<0.000000e+00> : vector<1xf32>
    %88 = vector.multi_reduction <add>, %87, %cst_26 [1, 2] : vector<1x1x64xf32> to vector<1xf32>
    %89 = vector.shape_cast %88 : vector<1xf32> to vector<1x1x1xf32>
    %90 = vector.extract %89[0, 0, 0] : f32 from vector<1x1x1xf32>
    %cst_27 = arith.constant 6.400000e+01 : f32
    %91 = arith.divf %90, %cst_27 : f32
    %cst_28 = arith.constant 0.000000e+00 : f32
    %92 = arith.subf %cst_28, %77 : f32
    %cst_29 = arith.constant 1.000000e+00 : f32
    %93 = arith.mulf %cst_29, %91 : f32
    %94 = arith.addf %92, %93 : f32
    %95 = tpu.iota {dimensions = array<i32: 1>} : vector<8x128xi32>
    %96 = tpu.iota {dimensions = array<i32: 0>} : vector<8x128xi32>
    %c1_i32 = arith.constant 1 : i32
    %97 = vector.broadcast %c1_i32 : i32 to vector<8x128xi32>
    %98 = arith.addi %96, %97 : vector<8x128xi32>
    %99 = arith.cmpi eq, %95, %98 : vector<8x128xi32>
    %100 = arith.extui %99 : vector<8x128xi1> to vector<8x128xi32>
    %101 = arith.sitofp %100 : vector<8x128xi32> to vector<8x128xf32>
    %cst_30 = arith.constant dense<0.000000e+00> : vector<1x128xf32>
    %102 = tpu.matmul %71, %101, %cst_30 {dimension_numbers = #tpu.dot_dimension_numbers<[1], [0], [0], [1], [0, 0, 1, 1], [], []>} : vector<1x8xf32>, vector<8x128xf32>, vector<1x128xf32> -> vector<1x128xf32>
    %103 = tpu.iota {dimensions = array<i32: 1>} : vector<1x128xi32>
    %c0_i32 = arith.constant 0 : i32
    %104 = vector.broadcast %c0_i32 : i32 to vector<1x128xi32>
    %105 = arith.cmpi eq, %103, %104 : vector<1x128xi32>
    %106 = vector.broadcast %94 : f32 to vector<1x128xf32>
    %107 = arith.select %105, %106, %102 : vector<1x128xi1>, vector<1x128xf32>
    %c0_31 = arith.constant 0 : index
    %c0_32 = arith.constant 0 : index
    %108 = vector.load %arg4[%c0_31, %c0_32] : memref<1x128xf32, #tpu.memory_space<vmem>>, vector<1x128xf32>
    tpu.vector_store %arg4[%c0_31, %c0_32], %107 {strides = array<i32>} : memref<1x128xf32, #tpu.memory_space<vmem>>, vector<1x128xf32>,
    return
  }
}

</mosaic_0001>

<llo_original>
// kernel: neg.3
$region0: #{neg.3}
  #allocation0 [shape = 's32[1]{0}', space=sflag, size = 0x4, scoped, tag = 'scoped memory for neg.3']
  %s0 = inlined_call_operand.vmem [shape: s32[128,3], index: 0, kind: input, shape index: {}]
  %s1 = inlined_call_operand.vmem [shape: s32[128,3], index: 1, kind: output, shape index: {}]
  %v2 = vld [vmem:[%s0] sm:$0x7]
  %3 = xla_tuple %v2
  %4 = xla_tuple %3
  %v5 = vsub.s32 0, %v2
  %6 = xla_tuple %v5
  %7 = vst [vmem:[%s1] sm:$0xf] %v5

// kernel: tile.23
$region0: #{tile.23}
  #allocation0 [shape = 's32[1]{0}', space=sflag, size = 0x4, scoped, tag = 'scoped memory for tile.23']
  %s0 = inlined_call_operand.vmem [shape: f32[128], index: 0, kind: input, shape index: {}]
  %s1 = inlined_call_operand.vmem [shape: f32[2,128], index: 1, kind: output, shape index: {}]
  // Predicated region
  $region2: #{tile.23} parent=0 // pred_check
    _
  $region3: #{tile.23} parent=0 // pred_check_branch
    %3 = sbr.rel (0) target = $region5
  $region4: #{tile.23} parent=0 // pred_region
    _
  $region5: #{tile.23} parent=0 // pred_fallthru
    _
  %v4 = vld [vmem:[%s0] ss:$0 sm:$0xff]
  %5 = vst [vmem:[%s1] sm:$0x3] %v4

// kernel: merging_forward.1
$region0: #{merging_forward.1}
  #allocation0 [shape = 'u32[]', space=smem, size = 0x4, offset = 0x4, fixed_abs, tag = 'smem constant byte address 0x4 - core index']
  #allocation1 [shape = 'u32[144,128]{1,0:T(1,128)}', space=vmem, size = 0x12000, scoped, tag = 'internal scratch']
  %s0 = inlined_call_operand.vmem [shape: f32[10,256], index: 0, kind: input, shape index: {}]
  %s1 = inlined_call_operand.vmem [shape: f32[32,256], index: 1, kind: input, shape index: {}]
  %s2 = inlined_call_operand.vmem [shape: f32[128,8], index: 2, kind: input, shape index: {}]
  %s3 = inlined_call_operand.vmem [shape: f32[16,128], index: 3, kind: input, shape index: {}]
  %s4 = inlined_call_operand.vmem [shape: f32[1,128], index: 4, kind: output, shape index: {}]
  %s5 = sld [smem:[#allocation0]]
  $region26: #{merging_forward.1} parent=0
    _
  %s7 = ssub.s32 1, %s5
  %s8 = scalar_select 0, %s7, %s5
  // Predicated region
  $region2: #{merging_forward.1} parent=0 // pred_check
    _
  $region3: #{merging_forward.1} parent=0 // pred_check_branch
    %10 = sbr.rel (0) target = $region5
  $region4: #{merging_forward.1} parent=0 // pred_region
    _
  $region5: #{merging_forward.1} parent=0 // pred_fallthru
    _
  // Predicated region
  $region6: #{merging_forward.1} parent=0 // pred_check
    _
  $region7: #{merging_forward.1} parent=0 // pred_check_branch
    %12 = sbr.rel (0) target = $region9
  $region8: #{merging_forward.1} parent=0 // pred_region
    _
  $region9: #{merging_forward.1} parent=0 // pred_fallthru
    _
  // Predicated region
  $region10: #{merging_forward.1} parent=0 // pred_check
    _
  $region11: #{merging_forward.1} parent=0 // pred_check_branch
    %14 = sbr.rel (0) target = $region13
  $region12: #{merging_forward.1} parent=0 // pred_region
    _
  $region13: #{merging_forward.1} parent=0 // pred_fallthru
    _
  // Predicated region
  $region14: #{merging_forward.1} parent=0 // pred_check
    _
  $region15: #{merging_forward.1} parent=0 // pred_check_branch
    %16 = sbr.rel (0) target = $region17
  $region16: #{merging_forward.1} parent=0 // pred_region
    _
  $region17: #{merging_forward.1} parent=0 // pred_fallthru
    _
  %v17 = vld [vmem:[%s0] sm:$0xff]
  %v18 = vld [vmem:[%s0 + $0x8] sm:$0xff]
  %v19 = vld [vmem:[%s0 + $0x10] sm:$0x3]
  %v20 = vld [vmem:[%s0 + $0x18] sm:$0x3]
  %v21 = vld [vmem:[%s1] sm:$0xff]
  %v22 = vld [vmem:[%s1 + $0x8] sm:$0xff]
  %v23 = vld [vmem:[%s1 + $0x10] sm:$0xff]
  %v24 = vld [vmem:[%s1 + $0x18] sm:$0xff]
  %v25 = vld [vmem:[%s1 + $0x20] sm:$0xff]
  %v26 = vld [vmem:[%s1 + $0x28] sm:$0xff]
  %v27 = vld [vmem:[%s1 + $0x30] sm:$0xff]
  %v28 = vld [vmem:[%s1 + $0x38] sm:$0xff]
  %v29 = vld [vmem:[%s3] sm:$0xff]
  %v30 = vld [vmem:[%s3 + $0x8] sm:$0xff]
  %32 = vset.pattern.permute.xlu0 9
  %33 = vperm.xlu0 %32, %v29
  %v34 = vpop.permute.xlu0 %33
  %37 = vset.pattern.permute.xlu0 9
  %38 = vperm.xlu0 %37, %v30
  %v39 = vpop.permute.xlu0 %38
  %vm41 = vcmask 72704
  %v42 = vsel %vm41, %v29, 0
  %v44 = vsel %vm41, %v30, 0
  %vm46 = vcmask 1040384
  %v48 = vsel %vm46, %v19, 0
  %v51 = vsel %vm46, %v20, 0
  %53 = vmatprep.subr.mxu0 0.0
  %54 = vmatpush1.msra.mxu0 0.0
  %55 = vmatprep.subr.mxu0 0.0
  %56 = vmatpush1.msra.mxu0 0.0
  %57 = vmatprep.subr.mxu0 0.0
  %58 = vmatpush1.msra.mxu0 0.0
  %59 = vmatprep.subr.mxu0 0.0
  %60 = vmatpush1.msra.mxu0 0.0
  %61 = vmatprep.subr.mxu0 0.0
  %62 = vmatpush1.msra.mxu0 0.0
  %63 = vmatprep.subr.mxu0 0.0
  %64 = vmatpush1.msra.mxu0 0.0
  %65 = vmatprep.subr.mxu0 0.0
  %66 = vmatpush1.msra.mxu0 0.0
  %67 = vmatprep.subr.mxu0 0.0
  %68 = vmatpush1.msra.mxu0 0.0
  %69 = vmatprep.subr.mxu0 0.0
  %70 = vmatpush1.msra.mxu0 0.0
  %71 = vmatprep.subr.mxu0 0.0
  %72 = vmatpush1.msra.mxu0 0.0
  %73 = vmatprep.subr.mxu0 0.0
  %74 = vmatpush1.msra.mxu0 0.0
  %75 = vmatprep.subr.mxu0 0.0
  %76 = vmatpush1.msra.mxu0 0.0
  %77 = vmatprep.subr.mxu0 0.0
  %78 = vmatpush1.msra.mxu0 0.0
  %79 = vmatprep.subr.mxu0 0.0
  %80 = vmatpush1.msra.mxu0 0.0
  %81 = vmatprep.subr.mxu0 %v51
  %82 = vmatpush1.msra.mxu0 %v48
  %83 = vmatprep.subr.mxu0 %v18
  %84 = vmatpush1.msra.mxu0 %v17
  %85 = vmatprep.subr.mxu0 0.0
  %86 = vmatpush2.msra.mxu0 0.0
  %87 = vmatprep.subr.mxu0 0.0
  %88 = vmatpush2.msra.mxu0 0.0
  %89 = vmatprep.subr.mxu0 0.0
  %90 = vmatpush2.msra.mxu0 0.0
  %91 = vmatprep.subr.mxu0 0.0
  %92 = vmatpush2.msra.mxu0 0.0
  %93 = vmatprep.subr.mxu0 0.0
  %94 = vmatpush2.msra.mxu0 0.0
  %95 = vmatprep.subr.mxu0 0.0
  %96 = vmatpush2.msra.mxu0 0.0
  %97 = vmatprep.subr.mxu0 0.0
  %98 = vmatpush2.msra.mxu0 0.0
  %99 = vmatprep.subr.mxu0 0.0
  %100 = vmatpush2.msra.mxu0 0.0
  %101 = vmatprep.subr.mxu0 0.0
  %102 = vmatpush2.msra.mxu0 0.0
  %103 = vmatprep.subr.mxu0 0.0
  %104 = vmatpush2.msra.mxu0 0.0
  %105 = vmatprep.subr.mxu0 0.0
  %106 = vmatpush2.msra.mxu0 0.0
  %107 = vmatprep.subr.mxu0 0.0
  %108 = vmatpush2.msra.mxu0 0.0
  %109 = vmatprep.subr.mxu0 0.0
  %110 = vmatpush2.msra.mxu0 0.0
  %111 = vmatprep.subr.mxu0 0.0
  %112 = vmatpush2.msra.mxu0 0.0
  %113 = vmatprep.subr.mxu0 0.0
  %114 = vmatpush2.msra.mxu0 0.0
  %115 = vmatprep.subr.mxu0 0.0
  %116 = vmatpush2.msra.mxu0 0.0
  %117 = vmatprep.mubr.f32.mxu0 0.0
  %118 = vmatmul.mubr.f32.gmra.mxu0 %v42
  %v119 = vpop.f32.mrf.mxu0
  %v120 = vadd.f32 %v34, %v119
  %v121 = vpop.f32.mrf.mxu0
  %v122 = vadd.f32 %v34, %v121
  %123 = vmatprep.mubr.f32.mxu0 0.0
  %124 = vmatmul.mubr.f32.gmra.mxu0 %v44
  %v125 = vpop.f32.mrf.mxu0
  %v126 = vadd.f32 %v39, %v125
  %v127 = vpop.f32.mrf.mxu0
  %v128 = vadd.f32 %v39, %v127
  %129 = vdwg.mxu0
  %v130 = vmax.f32 %v120, 0.0
  %v131 = vmax.f32 %v122, 0.0
  %v132 = vmax.f32 %v126, 0.0
  %v133 = vmax.f32 %v128, 0.0
  %134 = vset.pattern.permute.xlu0 10
  %135 = vperm.xlu0 %134, %v29
  %v136 = vpop.permute.xlu0 %135
  %138 = vset.pattern.permute.xlu0 10
  %139 = vperm.xlu0 %138, %v30
  %v140 = vpop.permute.xlu0 %139
  %v142 = vmul.f32 %v130, %v136
  %v143 = vmul.f32 %v131, %v136
  %v144 = vmul.f32 %v132, %v140
  %v145 = vmul.f32 %v133, %v140
  %v146 = vadd.f32 %v142, %v144
  %v147 = vrot.slane %v146, 4
  %v148 = vadd.f32 %v146, %v147
  %v149 = vrot.slane %v148, 2
  %v150 = vadd.f32 %v148, %v149
  %v151 = vrot.slane %v150, 1
  %v152 = vadd.f32 %v150, %v151
  %v153 = vadd.f32 %v143, %v145
  %v154 = vrot.slane %v153, 4
  %v155 = vadd.f32 %v153, %v154
  %v156 = vrot.slane %v155, 2
  %v157 = vadd.f32 %v155, %v156
  %v158 = vrot.slane %v157, 1
  %v159 = vadd.f32 %v157, %v158
  %160 = vset.pattern.permute.xlu0 11
  %161 = vperm.xlu0 %160, %v29
  %v162 = vpop.permute.xlu0 %161
  %v164 = vadd.f32 %v152, %v162
  %v165 = vadd.f32 %v159, %v162
  %v166 = vrot.slane %v19, 1
  %v167 = vrot.slane %v20, 1
  %v170 = vadd.f32 %v164, %v166
  %v171 = vadd.f32 %v165, %v167
  %v172 = vmax.f32 %v170, 0.0
  %v173 = vmax.f32 %v171, 0.0
  %vm174 = vcmp.ne.f32.partialorder %v170, %v170
  %vm175 = vcmp.ne.f32.partialorder %v171, %v171
  %v176 = vadd.f32 %v170, 0.0
  %v177 = vadd.f32 %v171, 0.0
  %v178 = vand.u32 2147483647, %v170
  %v179 = vand.u32 2147483647, %v171
  %v180 = vsub.f32 0.0, %v178
  %v181 = vsub.f32 0.0, %v179
  %v182 = vmul.f32 %v180, 1.442695
  %v183 = vpow.pop %v182
  %v184 = vmul.f32 %v181, 1.442695
  %v185 = vpow.pop %v184
  %v186 = vadd.f32 %v183, 1.0
  %v187 = vlog2.pop %v186
  %v188 = vmul.f32 %v187, 0.6931472
  %v189 = vmul.f32 -0.5, %v183
  %v190 = vadd.f32 %v189, 1.0
  %v191 = vmul.f32 %v190, %v183
  %v192 = vand.u32 2147483647, %v183
  %vm193 = vcmp.lt.f32.partialorder %v192, 0.0004427343
  %v194 = vsel %vm193, %v191, %v188
  %v195 = vadd.f32 %v185, 1.0
  %v196 = vlog2.pop %v195
  %v197 = vmul.f32 %v196, 0.6931472
  %v198 = vmul.f32 -0.5, %v185
  %v199 = vadd.f32 %v198, 1.0
  %v200 = vmul.f32 %v199, %v185
  %v201 = vand.u32 2147483647, %v185
  %vm202 = vcmp.lt.f32.partialorder %v201, 0.0004427343
  %v203 = vsel %vm202, %v200, %v197
  %v204 = vadd.f32 %v172, %v194
  %v205 = vadd.f32 %v173, %v203
  %v206 = vsel %vm174, %v176, %v204
  %v207 = vsel %vm175, %v177, %v205
  %v208 = vrcp.pop %v17
  %v209 = vmul.f32 1.0, %v208
  %v210 = vrcp.pop %v18
  %v211 = vmul.f32 1.0, %v210
  %v212 = vlog2.pop %v17
  %v213 = vmul.f32 %v212, 0.6931472
  %v214 = vlog2.pop %v18
  %v215 = vmul.f32 %v214, 0.6931472
  %v216 = vlaneseq
  %v217 = vshrl.u32 %v216, 7
  %v218 = vsub.s32 0, %v217
  %v219 = vrot.slane %v206, %v218
  %v220 = vlaneseq
  %v221 = vshrl.u32 %v220, 7
  %v222 = vsub.s32 0, %v221
  %v223 = vrot.slane %v207, %v222
  %v224 = vmul.f32 %v21, %v219
  %v225 = vmul.f32 %v22, %v223
  %v226 = vmul.f32 %v23, %v219
  %v227 = vmul.f32 %v24, %v223
  %v228 = vmul.f32 %v25, %v219
  %v229 = vmul.f32 %v26, %v223
  %v230 = vmul.f32 %v27, %v219
  %v231 = vmul.f32 %v28, %v223
  %v232 = vlaneseq
  %v233 = vshrl.u32 %v232, 7
  %v234 = vsub.s32 2, %v233
  %v235 = vrot.slane %v17, %v234
  %v236 = vlaneseq
  %v237 = vshrl.u32 %v236, 7
  %v238 = vsub.s32 2, %v237
  %v239 = vrot.slane %v18, %v238
  %v240 = vsub.f32 %v235, %v224
  %v241 = vsub.f32 %v239, %v225
  %v242 = vsub.f32 %v235, %v226
  %v243 = vsub.f32 %v239, %v227
  %v244 = vsub.f32 %v235, %v228
  %v245 = vsub.f32 %v239, %v229
  %v246 = vsub.f32 %v235, %v230
  %v247 = vsub.f32 %v239, %v231
  %v248 = vlaneseq
  %v249 = vshrl.u32 %v248, 7
  %v250 = vsub.s32 3, %v249
  %v251 = vrot.slane %v209, %v250
  %v252 = vlaneseq
  %v253 = vshrl.u32 %v252, 7
  %v254 = vsub.s32 3, %v253
  %v255 = vrot.slane %v211, %v254
  %v256 = vmul.f32 %v240, %v251
  %v257 = vmul.f32 %v241, %v255
  %v258 = vmul.f32 %v242, %v251
  %v259 = vmul.f32 %v243, %v255
  %v260 = vmul.f32 %v244, %v251
  %v261 = vmul.f32 %v245, %v255
  %v262 = vmul.f32 %v246, %v251
  %v263 = vmul.f32 %v247, %v255
  %v264 = vmul.f32 %v256, -0.5
  %v265 = vmul.f32 %v257, -0.5
  %v266 = vmul.f32 %v258, -0.5
  %v267 = vmul.f32 %v259, -0.5
  %v268 = vmul.f32 %v260, -0.5
  %v269 = vmul.f32 %v261, -0.5
  %v270 = vmul.f32 %v262, -0.5
  %v271 = vmul.f32 %v263, -0.5
  %v272 = vmul.f32 %v264, %v256
  %v273 = vmul.f32 %v265, %v257
  %v274 = vmul.f32 %v266, %v258
  %v275 = vmul.f32 %v267, %v259
  %v276 = vmul.f32 %v268, %v260
  %v277 = vmul.f32 %v269, %v261
  %v278 = vmul.f32 %v270, %v262
  %v279 = vmul.f32 %v271, %v263
  %v280 = vlaneseq
  %v281 = vshrl.u32 %v280, 7
  %v282 = vsub.s32 3, %v281
  %v283 = vrot.slane %v213, %v282
  %v284 = vlaneseq
  %v285 = vshrl.u32 %v284, 7
  %v286 = vsub.s32 3, %v285
  %v287 = vrot.slane %v215, %v286
  %v288 = vsub.f32 %v272, %v283
  %v289 = vsub.f32 %v273, %v287
  %v290 = vsub.f32 %v274, %v283
  %v291 = vsub.f32 %v275, %v287
  %v292 = vsub.f32 %v276, %v283
  %v293 = vsub.f32 %v277, %v287
  %v294 = vsub.f32 %v278, %v283
  %v295 = vsub.f32 %v279, %v287
  %v296 = vsub.f32 %v288, 0.9189385
  %v297 = vsub.f32 %v289, 0.9189385
  %v298 = vsub.f32 %v290, 0.9189385
  %v299 = vsub.f32 %v291, 0.9189385
  %v300 = vsub.f32 %v292, 0.9189385
  %v301 = vsub.f32 %v293, 0.9189385
  %v302 = vsub.f32 %v294, 0.9189385
  %v303 = vsub.f32 %v295, 0.9189385
  %v304 = vld [vmem:[%s2] sm:$0xff]
  %v305 = vld [vmem:[%s2 + $0x8] sm:$0xff]
  %v306 = vld [vmem:[%s2 + $0x10] sm:$0xff]
  %v307 = vld [vmem:[%s2 + $0x18] sm:$0xff]
  %v308 = vld [vmem:[%s2 + $0x20] sm:$0xff]
  %v309 = vld [vmem:[%s2 + $0x28] sm:$0xff]
  %v310 = vld [vmem:[%s2 + $0x30] sm:$0xff]
  %v311 = vld [vmem:[%s2 + $0x38] sm:$0xff]
  %v312 = vld [vmem:[%s2 + $0x40] sm:$0xff]
  %v313 = vld [vmem:[%s2 + $0x48] sm:$0xff]
  %v314 = vld [vmem:[%s2 + $0x50] sm:$0xff]
  %v315 = vld [vmem:[%s2 + $0x58] sm:$0xff]
  %v316 = vld [vmem:[%s2 + $0x60] sm:$0xff]
  %v317 = vld [vmem:[%s2 + $0x68] sm:$0xff]
  %v318 = vld [vmem:[%s2 + $0x70] sm:$0xff]
  %v319 = vld [vmem:[%s2 + $0x78] sm:$0xff]
  %320 = vmatprep.subr.mxu0 0.0
  %321 = vmatpush1.msra.mxu0 %v319
  %322 = vmatprep.subr.mxu0 0.0
  %323 = vmatpush1.msra.mxu0 %v318
  %324 = vmatprep.subr.mxu0 0.0
  %325 = vmatpush1.msra.mxu0 %v317
  %326 = vmatprep.subr.mxu0 0.0
  %327 = vmatpush1.msra.mxu0 %v316
  %328 = vmatprep.subr.mxu0 0.0
  %329 = vmatpush1.msra.mxu0 %v315
  %330 = vmatprep.subr.mxu0 0.0
  %331 = vmatpush1.msra.mxu0 %v314
  %332 = vmatprep.subr.mxu0 0.0
  %333 = vmatpush1.msra.mxu0 %v313
  %334 = vmatprep.subr.mxu0 0.0
  %335 = vmatpush1.msra.mxu0 %v312
  %336 = vmatprep.subr.mxu0 0.0
  %337 = vmatpush1.msra.mxu0 %v311
  %338 = vmatprep.subr.mxu0 0.0
  %339 = vmatpush1.msra.mxu0 %v310
  %340 = vmatprep.subr.mxu0 0.0
  %341 = vmatpush1.msra.mxu0 %v309
  %342 = vmatprep.subr.mxu0 0.0
  %343 = vmatpush1.msra.mxu0 %v308
  %344 = vmatprep.subr.mxu0 0.0
  %345 = vmatpush1.msra.mxu0 %v307
  %346 = vmatprep.subr.mxu0 0.0
  %347 = vmatpush1.msra.mxu0 %v306
  %348 = vmatprep.subr.mxu0 0.0
  %349 = vmatpush1.msra.mxu0 %v305
  %350 = vmatprep.subr.mxu0 0.0
  %351 = vmatpush1.msra.mxu0 %v304
  %352 = vmatprep.subr.mxu0 0.0
  %353 = vmatpush2.msra.mxu0 0.0
  %354 = vmatprep.subr.mxu0 0.0
  %355 = vmatpush2.msra.mxu0 0.0
  %356 = vmatprep.subr.mxu0 0.0
  %357 = vmatpush2.msra.mxu0 0.0
  %358 = vmatprep.subr.mxu0 0.0
  %359 = vmatpush2.msra.mxu0 0.0
  %360 = vmatprep.subr.mxu0 0.0
  %361 = vmatpush2.msra.mxu0 0.0
  %362 = vmatprep.subr.mxu0 0.0
  %363 = vmatpush2.msra.mxu0 0.0
  %364 = vmatprep.subr.mxu0 0.0
  %365 = vmatpush2.msra.mxu0 0.0
  %366 = vmatprep.subr.mxu0 0.0
  %367 = vmatpush2.msra.mxu0 0.0
  %368 = vmatprep.subr.mxu0 0.0
  %369 = vmatpush2.msra.mxu0 0.0
  %370 = vmatprep.subr.mxu0 0.0
  %371 = vmatpush2.msra.mxu0 0.0
  %372 = vmatprep.subr.mxu0 0.0
  %373 = vmatpush2.msra.mxu0 0.0
  %374 = vmatprep.subr.mxu0 0.0
  %375 = vmatpush2.msra.mxu0 0.0
  %376 = vmatprep.subr.mxu0 0.0
  %377 = vmatpush2.msra.mxu0 0.0
  %378 = vmatprep.subr.mxu0 0.0
  %379 = vmatpush2.msra.mxu0 0.0
  %380 = vmatprep.subr.mxu0 0.0
  %381 = vmatpush2.msra.mxu0 0.0
  %382 = vmatprep.subr.mxu0 0.0
  %383 = vmatpush2.msra.mxu0 0.0
  %384 = vmatprep.mubr.f32.mxu0 0.0
  %385 = vmatmul.mubr.f32.gmra.mxu0 %v296
  %v386 = vpop.f32.mrf.mxu0
  %v387 = vadd.f32 0.0, %v386
  %v388 = vpop.f32.mrf.mxu0
  %389 = vmatprep.mubr.f32.mxu0 0.0
  %390 = vmatmul.mubr.f32.gmra.mxu0 %v298
  %v391 = vpop.f32.mrf.mxu0
  %v392 = vadd.f32 0.0, %v391
  %v393 = vpop.f32.mrf.mxu0
  %394 = vmatprep.mubr.f32.mxu0 0.0
  %395 = vmatmul.mubr.f32.gmra.mxu0 %v300
  %v396 = vpop.f32.mrf.mxu0
  %v397 = vadd.f32 0.0, %v396
  %v398 = vpop.f32.mrf.mxu0
  %399 = vmatprep.mubr.f32.mxu0 0.0
  %400 = vmatmul.mubr.f32.gmra.mxu0 %v302
  %v401 = vpop.f32.mrf.mxu0
  %v402 = vadd.f32 0.0, %v401
  %v403 = vpop.f32.mrf.mxu0
  %404 = vdwg.mxu0
  %vm405 = vcmask 64512
  %v406 = vsel %vm405, %v387, 0.0
  %v407 = vsel %vm405, %v392, 0.0
  %v408 = vadd.f32 %v406, %v407
  %v409 = vsel %vm405, %v397, 0.0
  %v410 = vadd.f32 %v408, %v409
  %v411 = vsel %vm405, %v402, 0.0
  %v412 = vadd.f32 %v410, %v411
  %v413 = vrot.slane %v412, 4
  %v414 = vadd.f32 %v412, %v413
  %v415 = vrot.slane %v414, 2
  %v416 = vadd.f32 %v414, %v415
  %v417 = vrot.slane %v416, 1
  %v418 = vadd.f32 %v416, %v417
  %v419 = vmul.f32 %v418, 0.0009765625
  %420 = vmatprep.subr.mxu0 0.0
  %421 = vmatpush1.msra.mxu0 %v319
  %422 = vmatprep.subr.mxu0 0.0
  %423 = vmatpush1.msra.mxu0 %v318
  %424 = vmatprep.subr.mxu0 0.0
  %425 = vmatpush1.msra.mxu0 %v317
  %426 = vmatprep.subr.mxu0 0.0
  %427 = vmatpush1.msra.mxu0 %v316
  %428 = vmatprep.subr.mxu0 0.0
  %429 = vmatpush1.msra.mxu0 %v315
  %430 = vmatprep.subr.mxu0 0.0
  %431 = vmatpush1.msra.mxu0 %v314
  %432 = vmatprep.subr.mxu0 0.0
  %433 = vmatpush1.msra.mxu0 %v313
  %434 = vmatprep.subr.mxu0 0.0
  %435 = vmatpush1.msra.mxu0 %v312
  %436 = vmatprep.subr.mxu0 0.0
  %437 = vmatpush1.msra.mxu0 %v311
  %438 = vmatprep.subr.mxu0 0.0
  %439 = vmatpush1.msra.mxu0 %v310
  %440 = vmatprep.subr.mxu0 0.0
  %441 = vmatpush1.msra.mxu0 %v309
  %442 = vmatprep.subr.mxu0 0.0
  %443 = vmatpush1.msra.mxu0 %v308
  %444 = vmatprep.subr.mxu0 0.0
  %445 = vmatpush1.msra.mxu0 %v307
  %446 = vmatprep.subr.mxu0 0.0
  %447 = vmatpush1.msra.mxu0 %v306
  %448 = vmatprep.subr.mxu0 0.0
  %449 = vmatpush1.msra.mxu0 %v305
  %450 = vmatprep.subr.mxu0 0.0
  %451 = vmatpush1.msra.mxu0 %v304
  %452 = vmatprep.subr.mxu0 0.0
  %453 = vmatpush2.msra.mxu0 0.0
  %454 = vmatprep.subr.mxu0 0.0
  %455 = vmatpush2.msra.mxu0 0.0
  %456 = vmatprep.subr.mxu0 0.0
  %457 = vmatpush2.msra.mxu0 0.0
  %458 = vmatprep.subr.mxu0 0.0
  %459 = vmatpush2.msra.mxu0 0.0
  %460 = vmatprep.subr.mxu0 0.0
  %461 = vmatpush2.msra.mxu0 0.0
  %462 = vmatprep.subr.mxu0 0.0
  %463 = vmatpush2.msra.mxu0 0.0
  %464 = vmatprep.subr.mxu0 0.0
  %465 = vmatpush2.msra.mxu0 0.0
  %466 = vmatprep.subr.mxu0 0.0
  %467 = vmatpush2.msra.mxu0 0.0
  %468 = vmatprep.subr.mxu0 0.0
  %469 = vmatpush2.msra.mxu0 0.0
  %470 = vmatprep.subr.mxu0 0.0
  %471 = vmatpush2.msra.mxu0 0.0
  %472 = vmatprep.subr.mxu0 0.0
  %473 = vmatpush2.msra.mxu0 0.0
  %474 = vmatprep.subr.mxu0 0.0
  %475 = vmatpush2.msra.mxu0 0.0
  %476 = vmatprep.subr.mxu0 0.0
  %477 = vmatpush2.msra.mxu0 0.0
  %478 = vmatprep.subr.mxu0 0.0
  %479 = vmatpush2.msra.mxu0 0.0
  %480 = vmatprep.subr.mxu0 0.0
  %481 = vmatpush2.msra.mxu0 0.0
  %482 = vmatprep.subr.mxu0 0.0
  %483 = vmatpush2.msra.mxu0 0.0
  %484 = vmatprep.mubr.f32.mxu0 0.0
  %485 = vmatmul.mubr.f32.gmra.mxu0 %v297
  %v486 = vpop.f32.mrf.mxu0
  %v487 = vadd.f32 0.0, %v486
  %v488 = vpop.f32.mrf.mxu0
  %489 = vmatprep.mubr.f32.mxu0 0.0
  %490 = vmatmul.mubr.f32.gmra.mxu0 %v299
  %v491 = vpop.f32.mrf.mxu0
  %v492 = vadd.f32 0.0, %v491
  %v493 = vpop.f32.mrf.mxu0
  %494 = vmatprep.mubr.f32.mxu0 0.0
  %495 = vmatmul.mubr.f32.gmra.mxu0 %v301
  %v496 = vpop.f32.mrf.mxu0
  %v497 = vadd.f32 0.0, %v496
  %v498 = vpop.f32.mrf.mxu0
  %499 = vmatprep.mubr.f32.mxu0 0.0
  %500 = vmatmul.mubr.f32.gmra.mxu0 %v303
  %v501 = vpop.f32.mrf.mxu0
  %v502 = vadd.f32 0.0, %v501
  %v503 = vpop.f32.mrf.mxu0
  %504 = vdwg.mxu0
  %v505 = vsel %vm405, %v487, 0.0
  %v506 = vsel %vm405, %v492, 0.0
  %v507 = vadd.f32 %v505, %v506
  %v508 = vsel %vm405, %v497, 0.0
  %v509 = vadd.f32 %v507, %v508
  %v510 = vsel %vm405, %v502, 0.0
  %v511 = vadd.f32 %v509, %v510
  %v512 = vrot.slane %v511, 4
  %v513 = vadd.f32 %v511, %v512
  %v514 = vrot.slane %v513, 2
  %v515 = vadd.f32 %v513, %v514
  %v516 = vrot.slane %v515, 1
  %v517 = vadd.f32 %v515, %v516
  %v518 = vmul.f32 %v517, 0.0009765625
  %vm519 = vcmp.gt.f32.partialorder %v518, %v419
  %v520 = vsel %vm519, 1.0, 0.0
  %v521 = vsel %vm519, %v518, %v419
  %vm522 = vcmask 57344
  %v523 = vsel %vm522, %v521, 0.0
  %524 = vadd.xlane.f32.xlu0 %v523
  %v525 = vpop.xlane.xlu0 %524
  %v526 = vrot.slane %v525, 4
  %v527 = vadd.f32 %v525, %v526
  %v528 = vrot.slane %v527, 2
  %v529 = vadd.f32 %v527, %v528
  %v530 = vrot.slane %v529, 1
  %v531 = vadd.f32 %v529, %v530
  %s532 = vtos %v531
  %v533 = vrcp.pop 8.0
  %s534 = vtos %v533
  %s535 = smul.f32 %s532, %s534
  %v536 = vmul.f32 %v29, %v29
  %v538 = vrot.slane %v536, 7
  %v540 = vadd.f32 %v536, %v538
  %v541 = vsub.f32 %v540, 1.0
  %v542 = vmul.f32 %v541, 0.5
  %v543 = vlog2.pop %v29
  %v544 = vmul.f32 %v543, 0.6931472
  %v545 = vsub.f32 %v542, %v544
  %v547 = vrot.slane %v545, 1
  %548 = vrot.lane.b32.xlu0 %v547, 64
  %v549 = vpop.permute.xlu0 %548
  %vm551 = vcmask 516096
  %v552 = vsel %vm551, %v549, 0.0
  %553 = vadd.xlane.f32.xlu0 %v552
  %v554 = vpop.xlane.xlu0 %553
  %v555 = vrot.slane %v554, 4
  %v556 = vadd.f32 %v554, %v555
  %v557 = vrot.slane %v556, 2
  %v558 = vadd.f32 %v556, %v557
  %v559 = vrot.slane %v558, 1
  %v560 = vadd.f32 %v558, %v559
  %s561 = vtos %v560
  %v562 = vrcp.pop 64.0
  %s563 = vtos %v562
  %s564 = smul.f32 %s561, %s563
  %s565 = ssub.f32 0.0, %s535
  %s566 = sadd.f32 %s565, %s564
  %v567 = vlaneseq
  %v568 = vand.u32 %v567, 127
  %v569 = vlaneseq
  %v570 = vshrl.u32 %v569, 7
  %v571 = vadd.s32 %v570, 1
  %vm572 = vcmp.eq.s32.totalorder %v568, %v571
  %v573 = vsel %vm572, 1, 0
  %v574 = vcvt.s32.f32 %v573
  %v576 = vsel %vm405, %v520, 0
  %578 = vmatprep.subr.mxu0 0.0
  %579 = vmatpush1.msra.mxu0 0.0
  %580 = vmatprep.subr.mxu0 0.0
  %581 = vmatpush1.msra.mxu0 0.0
  %582 = vmatprep.subr.mxu0 0.0
  %583 = vmatpush1.msra.mxu0 0.0
  %584 = vmatprep.subr.mxu0 0.0
  %585 = vmatpush1.msra.mxu0 0.0
  %586 = vmatprep.subr.mxu0 0.0
  %587 = vmatpush1.msra.mxu0 0.0
  %588 = vmatprep.subr.mxu0 0.0
  %589 = vmatpush1.msra.mxu0 0.0
  %590 = vmatprep.subr.mxu0 0.0
  %591 = vmatpush1.msra.mxu0 0.0
  %592 = vmatprep.subr.mxu0 0.0
  %593 = vmatpush1.msra.mxu0 0.0
  %594 = vmatprep.subr.mxu0 0.0
  %595 = vmatpush1.msra.mxu0 0.0
  %596 = vmatprep.subr.mxu0 0.0
  %597 = vmatpush1.msra.mxu0 0.0
  %598 = vmatprep.subr.mxu0 0.0
  %599 = vmatpush1.msra.mxu0 0.0
  %600 = vmatprep.subr.mxu0 0.0
  %601 = vmatpush1.msra.mxu0 0.0
  %602 = vmatprep.subr.mxu0 0.0
  %603 = vmatpush1.msra.mxu0 0.0
  %604 = vmatprep.subr.mxu0 0.0
  %605 = vmatpush1.msra.mxu0 0.0
  %606 = vmatprep.subr.mxu0 0.0
  %607 = vmatpush1.msra.mxu0 0.0
  %608 = vmatprep.subr.mxu0 0.0
  %609 = vmatpush1.msra.mxu0 %v574
  %610 = vmatprep.subr.mxu0 0.0
  %611 = vmatpush2.msra.mxu0 0.0
  %612 = vmatprep.subr.mxu0 0.0
  %613 = vmatpush2.msra.mxu0 0.0
  %614 = vmatprep.subr.mxu0 0.0
  %615 = vmatpush2.msra.mxu0 0.0
  %616 = vmatprep.subr.mxu0 0.0
  %617 = vmatpush2.msra.mxu0 0.0
  %618 = vmatprep.subr.mxu0 0.0
  %619 = vmatpush2.msra.mxu0 0.0
  %620 = vmatprep.subr.mxu0 0.0
  %621 = vmatpush2.msra.mxu0 0.0
  %622 = vmatprep.subr.mxu0 0.0
  %623 = vmatpush2.msra.mxu0 0.0
  %624 = vmatprep.subr.mxu0 0.0
  %625 = vmatpush2.msra.mxu0 0.0
  %626 = vmatprep.subr.mxu0 0.0
  %627 = vmatpush2.msra.mxu0 0.0
  %628 = vmatprep.subr.mxu0 0.0
  %629 = vmatpush2.msra.mxu0 0.0
  %630 = vmatprep.subr.mxu0 0.0
  %631 = vmatpush2.msra.mxu0 0.0
  %632 = vmatprep.subr.mxu0 0.0
  %633 = vmatpush2.msra.mxu0 0.0
  %634 = vmatprep.subr.mxu0 0.0
  %635 = vmatpush2.msra.mxu0 0.0
  %636 = vmatprep.subr.mxu0 0.0
  %637 = vmatpush2.msra.mxu0 0.0
  %638 = vmatprep.subr.mxu0 0.0
  %639 = vmatpush2.msra.mxu0 0.0
  %640 = vmatprep.subr.mxu0 0.0
  %641 = vmatpush2.msra.mxu0 0.0
  %642 = vmatprep.mubr.f32.mxu0 0.0
  %643 = vmatmul.mubr.f32.gmra.mxu0 %v576
  %v644 = vpop.f32.mrf.mxu0
  %v645 = vadd.f32 0.0, %v644
  %v646 = vpop.f32.mrf.mxu0
  %647 = vdwg.mxu0
  %vm648 = vcmp.eq.s32.totalorder %v568, 0
  %v649 = vstv %s566
  %v650 = vsel %vm648, %v649, %v645
  %651 = vst [vmem:[%s4] sm:$0x1] %v650
  // Predicated region
  $region18: #{merging_forward.1} parent=0 // pred_check
    _
  $region19: #{merging_forward.1} parent=0 // pred_check_branch
    %653 = sbr.rel (0) target = $region21
  $region20: #{merging_forward.1} parent=0 // pred_region
    _
  $region21: #{merging_forward.1} parent=0 // pred_fallthru
    _
  // Predicated region
  $region22: #{merging_forward.1} parent=0 // pred_check
    _
  $region23: #{merging_forward.1} parent=0 // pred_check_branch
    %655 = sbr.rel (0) target = $region25
  $region24: #{merging_forward.1} parent=0 // pred_region
    _
  $region25: #{merging_forward.1} parent=0 // pred_fallthru
    _

</llo_original>
